<compile_context>
chip_gen: v6e
topology: v6e:2x2x1
jax: 0.10.0
libtpu: 0.0.40
codegen_flags: <defaults>
</compile_context>

<pallas_src>
import functools

import jax
import jax.numpy as jnp
from jax import lax
from jax.experimental import pallas as pl
from jax.experimental.pallas import tpu as pltpu

KH = KW = 3
STRIDE = 2
PADDING = 1
EPS = 1e-5


def _conv_bn_relu_kernel(w_ref, p_ref, gb_ref, o_ref, *, nhw_valid):
    """Single invocation, everything resident in VMEM.

    w_ref  : (Cout, K)        conv weights, K = Cin*KH*KW, bf16
    p_ref  : (K, NHWpad)      im2col patches (cols n-major, then h, w), bf16
    gb_ref : (Cout, 2)        BN gamma (col 0) / beta (col 1), f32
    o_ref  : (Cout, NHWpad)   lane-dense f32 output slab
    """
    # Conv as one MXU matmul; bf16 operands, f32 accumulation.
    y = jnp.dot(w_ref[...], p_ref[...], preferred_element_type=jnp.float32)

    # BatchNorm2d training-mode batch stats over N*H*W.
    # Padded NHW columns of p are exactly zero => the corresponding y columns
    # are exactly zero, so sums over the padded extent equal the valid sums.
    inv_cnt = 1.0 / float(nhw_valid)
    s = jnp.sum(y, axis=1, keepdims=True)           # f32 sums
    ss = jnp.sum(y * y, axis=1, keepdims=True)
    mean = s * inv_cnt
    var = ss * inv_cnt - mean * mean
    inv = lax.rsqrt(var + EPS)

    gamma = gb_ref[:, 0:1]
    beta = gb_ref[:, 1:2]
    scale = inv * gamma                             # (Cout, 1) - per-channel, free
    shift = beta - mean * scale

    # ReLU; Dropout2d(p=0.0) is the identity (no RNG needed).
    o_ref[...] = jnp.maximum(y * scale + shift, 0.0).astype(o_ref.dtype)


def conv2d_block(x, weight, bias, gamma, beta):
    """x: (N, Cin, H, W); weight: (Cout, Cin, KH, KW) (PyTorch Conv2d layout)."""
    n, cin, h, w = x.shape
    cout = weight.shape[0]
    hout = (h + 2 * PADDING - KH) // STRIDE + 1
    wout = (w + 2 * PADDING - KW) // STRIDE + 1
    nhw = n * hout * wout
    nhw_pad = ((nhw + 127) // 128) * 128            # lane-dense output slab
    k = cin * KH * KW                               # left unpadded; Mosaic pads in-layout

    # Conv bias cancels exactly under training-mode BatchNorm: the batch mean
    # absorbs the per-channel constant and the variance is unchanged, so the
    # bias is not sent to the kernel at all.
    del bias

    # --- wrapper-side im2col (layout plumbing only), in bf16 -------------------
    xb = x.astype(jnp.bfloat16)
    x_pad = jnp.pad(xb, ((0, 0), (0, 0), (PADDING, PADDING), (PADDING, PADDING)))
    taps = []
    for kh in range(KH):
        for kw in range(KW):
            taps.append(
                lax.slice(
                    x_pad,
                    (0, 0, kh, kw),
                    (n, cin,
                     kh + STRIDE * (hout - 1) + 1,
                     kw + STRIDE * (wout - 1) + 1),
                    (1, 1, STRIDE, STRIDE)))        # (N, Cin, Hout, Wout)
    patches = jnp.stack(taps, axis=2)               # (N, Cin, KH*KW, Hout, Wout)
    patches = patches.transpose(1, 2, 0, 3, 4)      # (Cin, KH*KW, N, Hout, Wout)
    patches = patches.reshape(k, nhw)
    if nhw_pad != nhw:
        patches = jnp.pad(patches, ((0, 0), (0, nhw_pad - nhw)))

    w_mat = weight.reshape(cout, k).astype(jnp.bfloat16)
    gb = jnp.stack([gamma.astype(jnp.float32), beta.astype(jnp.float32)], axis=1)  # (Cout, 2)

    kernel = functools.partial(_conv_bn_relu_kernel, nhw_valid=nhw)

    y = pl.pallas_call(
        kernel,
        out_shape=jax.ShapeDtypeStruct((cout, nhw_pad), jnp.float32),
        in_specs=[pl.BlockSpec(memory_space=pltpu.MemorySpace.VMEM)] * 3,
        out_specs=pl.BlockSpec(memory_space=pltpu.MemorySpace.VMEM),
    )(w_mat, patches, gb)

    # (Cout, NHWpad) -> (N, Cout, Hout, Wout)
    y = y[:, :nhw].reshape(cout, n, hout, wout).transpose(1, 0, 2, 3)
    return y


def reference(x, weight, bias, gamma, beta):
    """Pure-JAX reference of the PyTorch forward (training-mode BN).

    Conv operands are rounded to bf16 (to match the kernel's MXU operand dtype);
    all accumulation / BN math is f32, like the kernel. The conv bias is kept
    here so the kernel's bias-cancellation is verified numerically.
    """
    xr = x.astype(jnp.bfloat16).astype(jnp.float32)
    wr = weight.astype(jnp.bfloat16).astype(jnp.float32)
    y = lax.conv_general_dilated(
        xr, wr,
        window_strides=(STRIDE, STRIDE),
        padding=((PADDING, PADDING), (PADDING, PADDING)),
        dimension_numbers=('NCHW', 'OIHW', 'NCHW'),
        precision=lax.Precision.HIGHEST)
    y = y + bias[None, :, None, None]
    mean = jnp.mean(y, axis=(0, 2, 3), keepdims=True)
    var = jnp.mean((y - mean) ** 2, axis=(0, 2, 3), keepdims=True)
    y = (y - mean) * lax.rsqrt(var + EPS)
    y = y * gamma[None, :, None, None] + beta[None, :, None, None]
    return jnp.maximum(y, 0.0)


if __name__ == "__main__":
    N, CIN, COUT, H, W = 2, 4, 8, 16, 16

    key = jax.random.PRNGKey(0)
    k1, k2, k3, k4, k5 = jax.random.split(key, 5)
    x = jax.random.normal(k1, (N, CIN, H, W), jnp.float32)
    fan_in = CIN * KH * KW
    bound = 1.0 / (fan_in ** 0.5)
    # Conv2d weight layout: (out_channels, in_channels, kH, kW)
    weight = jax.random.uniform(k2, (COUT, CIN, KH, KW), jnp.float32, -bound, bound)
    bias = jax.random.uniform(k3, (COUT,), jnp.float32, -bound, bound)
    gamma = (1.0 + 0.1 * jax.random.normal(k4, (COUT,))).astype(jnp.float32)
    beta = (0.1 * jax.random.normal(k5, (COUT,))).astype(jnp.float32)

    out = jax.block_until_ready(conv2d_block(x, weight, bias, gamma, beta))
    ref = reference(x, weight, bias, gamma, beta)

    hout = (H + 2 * PADDING - KH) // STRIDE + 1
    wout = (W + 2 * PADDING - KW) // STRIDE + 1
    assert out.shape == (N, COUT, hout, wout), out.shape
    max_err = float(jnp.max(jnp.abs(out - ref)))
    assert jnp.allclose(out, ref, atol=5e-4, rtol=5e-4), max_err
    print("KERNEL_OK")
</pallas_src>

<mosaic_0001>
module attributes {stable_mosaic.version = 11 : i64} {
  func.func @_conv_bn_relu_kernel(%arg0: memref<8x36xbf16, #tpu.memory_space<vmem>>, %arg1: memref<36x128xbf16, #tpu.memory_space<vmem>>, %arg2: memref<8x2xf32, #tpu.memory_space<vmem>>, %arg3: memref<8x128xf32, #tpu.memory_space<vmem>>) attributes {dimension_semantics = [], scalar_prefetch = 0 : i64, scratch_operands = 0 : i64, tpu.core_type = #tpu.core_type<tc>} {
    %c0 = arith.constant 0 : index
    %c0_0 = arith.constant 0 : index
    %0 = vector.load %arg0[%c0, %c0_0] : memref<8x36xbf16, #tpu.memory_space<vmem>>, vector<8x36xbf16>
    %c0_1 = arith.constant 0 : index
    %c0_2 = arith.constant 0 : index
    %1 = vector.load %arg1[%c0_1, %c0_2] : memref<36x128xbf16, #tpu.memory_space<vmem>>, vector<36x128xbf16>
    %cst = arith.constant dense<0.000000e+00> : vector<8x128xf32>
    %2 = tpu.matmul %0, %1, %cst {dimension_numbers = #tpu.dot_dimension_numbers<[1], [0], [0], [1], [0, 0, 1, 1], [], []>} : vector<8x36xbf16>, vector<36x128xbf16>, vector<8x128xf32> -> vector<8x128xf32>
    %cst_3 = arith.constant dense<0.000000e+00> : vector<8xf32>
    %3 = vector.multi_reduction <add>, %2, %cst_3 [1] : vector<8x128xf32> to vector<8xf32>
    %4 = vector.shape_cast %3 : vector<8xf32> to vector<8x1xf32>
    %5 = arith.mulf %2, %2 : vector<8x128xf32>
    %cst_4 = arith.constant dense<0.000000e+00> : vector<8xf32>
    %6 = vector.multi_reduction <add>, %5, %cst_4 [1] : vector<8x128xf32> to vector<8xf32>
    %7 = vector.shape_cast %6 : vector<8xf32> to vector<8x1xf32>
    %cst_5 = arith.constant 7.812500e-03 : f32
    %8 = vector.broadcast %cst_5 : f32 to vector<8x1xf32>
    %9 = arith.mulf %4, %8 : vector<8x1xf32>
    %cst_6 = arith.constant 7.812500e-03 : f32
    %10 = vector.broadcast %cst_6 : f32 to vector<8x1xf32>
    %11 = arith.mulf %7, %10 : vector<8x1xf32>
    %12 = arith.mulf %9, %9 : vector<8x1xf32>
    %13 = arith.subf %11, %12 : vector<8x1xf32>
    %cst_7 = arith.constant 9.99999974E-6 : f32
    %14 = vector.broadcast %cst_7 : f32 to vector<8x1xf32>
    %15 = arith.addf %13, %14 : vector<8x1xf32>
    %16 = math.rsqrt %15 : vector<8x1xf32>
    %c0_8 = arith.constant 0 : index
    %c0_9 = arith.constant 0 : index
    %17 = vector.load %arg2[%c0_8, %c0_9] : memref<8x2xf32, #tpu.memory_space<vmem>>, vector<8x1xf32>
    %c0_10 = arith.constant 0 : index
    %c1 = arith.constant 1 : index
    %18 = vector.load %arg2[%c0_10, %c1] : memref<8x2xf32, #tpu.memory_space<vmem>>, vector<8x1xf32>
    %19 = arith.mulf %16, %17 : vector<8x1xf32>
    %20 = arith.mulf %9, %19 : vector<8x1xf32>
    %21 = arith.subf %18, %20 : vector<8x1xf32>
    %22 = vector.broadcast %19 : vector<8x1xf32> to vector<8x128xf32>
    %23 = arith.mulf %2, %22 : vector<8x128xf32>
    %24 = vector.broadcast %21 : vector<8x1xf32> to vector<8x128xf32>
    %25 = arith.addf %23, %24 : vector<8x128xf32>
    %cst_11 = arith.constant 0.000000e+00 : f32
    %26 = vector.broadcast %cst_11 : f32 to vector<8x128xf32>
    %27 = arith.maximumf %25, %26 : vector<8x128xf32>
    %c0_12 = arith.constant 0 : index
    %c0_13 = arith.constant 0 : index
    %28 = vector.load %arg3[%c0_12, %c0_13] : memref<8x128xf32, #tpu.memory_space<vmem>>, vector<8x128xf32>
    tpu.vector_store %arg3[%c0_12, %c0_13], %27 {strides = array<i32>} : memref<8x128xf32, #tpu.memory_space<vmem>>, vector<8x128xf32>,
    return
  }
}

</mosaic_0001>

<llo_original>
// kernel: tpu_custom_call.1
$region0: #{tpu_custom_call.1}
  #allocation0 [shape = 'u32[]', space=smem, size = 0x4, offset = 0x4, fixed_abs, tag = 'smem constant byte address 0x4 - core index']
  #allocation1 [shape = 'u32[144,128]{1,0:T(1,128)}', space=vmem, size = 0x12000, scoped, tag = 'internal scratch']
  %s0 = inlined_call_operand.vmem [shape: bf16[8,36], index: 0, kind: input, shape index: {}]
  %s1 = inlined_call_operand.hbm [shape: bf16[36,128], index: 1, kind: input, shape index: {}]
  %s2 = inlined_call_operand.vmem [shape: f32[8,2], index: 2, kind: input, shape index: {}]
  %s3 = inlined_call_operand.hbm [shape: f32[8,128], index: 3, kind: output, shape index: {}]
  %s4 = sld [smem:[#allocation0]]
  $region26: #{tpu_custom_call.1} parent=0
    _
  %s6 = ssub.s32 1, %s4
  %s7 = scalar_select 0, %s6, %s4
  $region1: #{tpu_custom_call.1} parent=0
    #allocation2 [shape = 'u8[10240]{0}', space=vmem, size = 0x2800, scoped, tag = 'input window, operand 1, single buffered']
    #allocation3 [shape = 's32[1]{0}', space=sflag, size = 0x4, scoped, tag = 'scoped memory for tpu_custom_call.1']
    #allocation4 [shape = 's32[1]{0}', space=sflag, size = 0x4, scoped, tag = 'scoped memory for tpu_custom_call.1']
    #allocation5 [shape = 'u8[4096]{0}', space=vmem, size = 0x1000, scoped, tag = 'output window, operand 0, single buffered']
    %8 = vsyncpa [#allocation3], 0
    %9 = vsyncpa [#allocation4], 0
    // Predicated region
    $region2: #{tpu_custom_call.1} parent=1 // pred_check
      _
    $region3: #{tpu_custom_call.1} parent=1 // pred_check_branch
      %11 = sbr.rel (0) target = $region5
    $region4: #{tpu_custom_call.1} parent=1 // pred_region
      _
    $region5: #{tpu_custom_call.1} parent=1 // pred_fallthru
      _
    // Predicated region
    $region6: #{tpu_custom_call.1} parent=1 // pred_check
      _
    $region7: #{tpu_custom_call.1} parent=1 // pred_check_branch
      %13 = sbr.rel (0) target = $region9
    $region8: #{tpu_custom_call.1} parent=1 // pred_region
      %s15 = ssub.s32 320, 320
      %16 = vsyncadd [#allocation3], %s15
      %s17 = sshll.u32 [#allocation2], 4
      %s18 = int_to_ptr.vmem [resolvable:$true] %s17
      %23 = dma.hbm_to_vmem [thread:$0]  %s1, 320, %s18, [#allocation3], 64, 64, 4
    $region9: #{tpu_custom_call.1} parent=1 // pred_fallthru
      _
    // Predicated region
    $region10: #{tpu_custom_call.1} parent=1 // pred_check
      _
    $region11: #{tpu_custom_call.1} parent=1 // pred_check_branch
      %25 = sbr.rel (0) target = $region13
    $region12: #{tpu_custom_call.1} parent=1 // pred_region
      _
    $region13: #{tpu_custom_call.1} parent=1 // pred_fallthru
      _
    // Predicated region
    $region14: #{tpu_custom_call.1} parent=1 // pred_check
      _
    $region15: #{tpu_custom_call.1} parent=1 // pred_check_branch
      %27 = sbr.rel (0) target = $region17
    $region16: #{tpu_custom_call.1} parent=1 // pred_region
      %28 = dma.done [#allocation3], 320
    $region17: #{tpu_custom_call.1} parent=1 // pred_fallthru
      _
    %v30 = vld [vmem:[%s0] sm:$0xf]
    %v31 = vld [vmem:[#allocation2] sm:$0xf]
    %v32 = vld [vmem:[#allocation2 + $0x4] sm:$0xf]
    %v33 = vld [vmem:[#allocation2 + $0x8] sm:$0xf]
    %v34 = vld [vmem:[#allocation2 + $0xc] sm:$0xf]
    %v35 = vld [vmem:[#allocation2 + $0x10] sm:$0x3]
    %v41 = vunpack.c.l.b16 %v31
    %v42 = vunpack.c.l.b16 %v32
    %v43 = vunpack.c.l.b16 %v33
    %v44 = vunpack.c.l.b16 %v34
    %v45 = vunpack.c.l.b16 %v35
    %v46 = vpack.c.b16 %v42, %v41
    %v47 = vpack.c.b16 %v44, %v43
    %v48 = vpack.c.b16 %v45, %v45
    %vm51 = vcmask 293888
    %v53 = vsel %vm51, %v30, 0
    %vm55 = vcmask 1041408
    %v57 = vsel %vm55, %v48, 0
    %59 = vmatprep.subr.bf16.mxu0 0
    %60 = vmatpush1.bf16.msra.mxu0 0
    %61 = vmatprep.subr.bf16.mxu0 0
    %62 = vmatpush1.bf16.msra.mxu0 0
    %63 = vmatprep.subr.bf16.mxu0 0
    %64 = vmatpush1.bf16.msra.mxu0 0
    %65 = vmatprep.subr.bf16.mxu0 0
    %66 = vmatpush1.bf16.msra.mxu0 0
    %67 = vmatprep.subr.bf16.mxu0 0
    %68 = vmatpush1.bf16.msra.mxu0 0
    %69 = vmatprep.subr.bf16.mxu0 0
    %70 = vmatpush1.bf16.msra.mxu0 %v57
    %71 = vmatprep.subr.bf16.mxu0 0
    %72 = vmatpush1.bf16.msra.mxu0 %v47
    %73 = vmatprep.subr.bf16.mxu0 0
    %74 = vmatpush1.bf16.msra.mxu0 %v46
    %75 = vmatprep.subr.bf16.mxu0 0
    %76 = vmatpush2.bf16.msra.mxu0 0
    %77 = vmatprep.subr.bf16.mxu0 0
    %78 = vmatpush2.bf16.msra.mxu0 0
    %79 = vmatprep.subr.bf16.mxu0 0
    %80 = vmatpush2.bf16.msra.mxu0 0
    %81 = vmatprep.subr.bf16.mxu0 0
    %82 = vmatpush2.bf16.msra.mxu0 0
    %83 = vmatprep.subr.bf16.mxu0 0
    %84 = vmatpush2.bf16.msra.mxu0 0
    %85 = vmatprep.subr.bf16.mxu0 0
    %86 = vmatpush2.bf16.msra.mxu0 0
    %87 = vmatprep.subr.bf16.mxu0 0
    %88 = vmatpush2.bf16.msra.mxu0 0
    %89 = vmatprep.subr.bf16.mxu0 0
    %90 = vmatpush2.bf16.msra.mxu0 0
    %91 = vmatprep.mubr.bf16.mxu0 0
    %92 = vmatmul.mubr.bf16.gmra.mxu0 %v53
    %v93 = vpop.f32.mrf.mxu0
    %v94 = vadd.f32 0.0, %v93
    %v95 = vpop.f32.mrf.mxu0
    %v96 = vpop.f32.mrf.mxu0
    %v97 = vpop.f32.mrf.mxu0
    %98 = vdwg.mxu0
    %99 = vadd.xlane.f32.xlu0 %v94
    %v100 = vpop.xlane.xlu0 %99
    %v101 = vmul.f32 %v94, %v94
    %102 = vadd.xlane.f32.xlu0 %v101
    %v103 = vpop.xlane.xlu0 %102
    %v104 = vmul.f32 %v100, 0.0078125
    %v105 = vmul.f32 %v103, 0.0078125
    %v106 = vmul.f32 %v104, %v104
    %v107 = vsub.f32 %v105, %v106
    %v108 = vadd.f32 %v107, 1e-05
    %v109 = vrsqrt.pop %v108
    %v110 = vld [vmem:[%s2] sm:$0xff]
    %v111 = vmul.f32 %v109, %v110
    %v112 = vmul.f32 %v104, %v111
    %114 = vrot.lane.b32.xlu0 %v112, 1
    %v115 = vpop.permute.xlu0 %114
    %v117 = vsub.f32 %v110, %v115
    %119 = vset.pattern.permute.xlu0 0
    %120 = vperm.xlu0 %119, %v111
    %v121 = vpop.permute.xlu0 %120
    %v123 = vmul.f32 %v94, %v121
    %125 = vset.pattern.permute.xlu0 1
    %126 = vperm.xlu0 %125, %v117
    %v127 = vpop.permute.xlu0 %126
    %v129 = vadd.f32 %v123, %v127
    %v130 = vmax.f32 %v129, 0.0
    %131 = vst [vmem:[#allocation5] sm:$0xff] %v130
    // Predicated region
    $region18: #{tpu_custom_call.1} parent=1 // pred_check
      _
    $region19: #{tpu_custom_call.1} parent=1 // pred_check_branch
      %133 = sbr.rel (0) target = $region21
    $region20: #{tpu_custom_call.1} parent=1 // pred_region
      %s135 = ssub.s32 128, 128
      %136 = vsyncadd [#allocation4], %s135
      %s138 = sshll.u32 [#allocation5], 4
      %s139 = int_to_ptr.vmem [resolvable:$true] %s138
      %141 = dma.vmem_to_hbm [thread:$0]  %s139, 128, %s3, [#allocation4]
    $region21: #{tpu_custom_call.1} parent=1 // pred_fallthru
      _
    // Predicated region
    $region22: #{tpu_custom_call.1} parent=1 // pred_check
      _
    $region23: #{tpu_custom_call.1} parent=1 // pred_check_branch
      %143 = sbr.rel (0) target = $region25
    $region24: #{tpu_custom_call.1} parent=1 // pred_region
      %144 = dma.done [#allocation4], 128
    $region25: #{tpu_custom_call.1} parent=1 // pred_fallthru
      _
    %145 = vsyncpa [#allocation3], 1
    %146 = vsyncpa [#allocation4], 1

</llo_original>
